<compile_context>
chip_gen: v5e
topology: v5e:2x2
jax: 0.10.0
libtpu: 0.0.40
codegen_flags: <defaults>
</compile_context>

<pallas_src>
import functools

import jax
import jax.numpy as jnp
from jax import lax
from jax.experimental import pallas as pl
from jax.experimental.pallas import tpu as pltpu

NET_DIM = 64
_ROW_CHUNK = 128   # rows per inner fori_loop step; keeps h1/h2 in the 64-vreg file


def _round_up(n, m):
    return ((n + m - 1) // m) * m


def _cdiv(a, b):
    return -(-a // b)


def _vmem_capacity_bytes():
    """Physical VMEM of the attached TPU; conservative (v7x-sized) fallback."""
    try:
        info = pltpu.get_tpu_info()
        for attr in ("vmem_capacity_bytes", "vmem_size_bytes", "vmem_bytes"):
            v = getattr(info, attr, None)
            if v:
                return int(v)
    except Exception:
        pass
    return 64 << 20


def _critic_kernel(x_ref, w1_ref, b1_ref, w2_ref, b2_ref, w3_ref, b3_ref, o_ref,
                   *, chunk):
    """One batch tile per grid step; weights/biases are the same resident block
    every step.  The tile is processed in `chunk`-row sub-chunks so the f32
    intermediates stay in vregs (no VMEM spill round-trips)."""
    rows = x_ref.shape[0]          # static tile row count
    n_chunks = rows // chunk

    def body(c, carry):
        r = pl.multiple_of(c * chunk, chunk)
        x = x_ref[pl.ds(r, chunk), :]                                   # (chunk, S) bf16
        h1 = jnp.dot(x, w1_ref[...], preferred_element_type=jnp.float32) + b1_ref[...]
        h1 = jnp.maximum(h1, 0.0).astype(jnp.bfloat16)                  # bf16 back into MXU
        h2 = jnp.dot(h1, w2_ref[...], preferred_element_type=jnp.float32) + b2_ref[...]
        h2 = jnp.maximum(h2, 0.0)
        # fc3 has one output unit (N=1): an MXU matmul would idle 127/255 of the
        # array and serialize the result FIFO.  Use a VPU multiply + XLU lane
        # reduction against the (1, 64) weight row instead (XLU has slack here).
        y = jnp.sum(h2 * w3_ref[...], axis=-1, keepdims=True) + b3_ref[...]
        o_ref[pl.ds(r, chunk), :] = y.astype(o_ref.dtype)
        return carry

    lax.fori_loop(0, n_chunks, body, 0, unroll=min(8, n_chunks))


def _plan_tiles(B, state_dim, tile_budget_bytes):
    """Pick (num_tiles, rows_per_tile, inner_chunk) from a VMEM byte budget."""
    # Per row: double-buffered bf16 x tile + double-buffered f32 output column.
    per_row = 2 * state_dim * 2 + 2 * 4
    # Fixed: resident params (bf16 w1/w2, f32 biases + w3 row; x2 for buffering)
    # plus in-flight per-chunk f32 intermediates (h1, h2, fc3 temporaries).
    fixed = 2 * (2 * (state_dim * NET_DIM + NET_DIM * NET_DIM) + 4 * (3 * NET_DIM + 1))
    fixed += 3 * _ROW_CHUNK * NET_DIM * 4
    tb_cap = (tile_budget_bytes - fixed) // per_row
    tb_cap = max(256, min(4096, (tb_cap // 256) * 256))

    n = _cdiv(B, tb_cap)
    if n == 1 and B >= 1024:
        n = 2                      # keep >= 2 grid steps so both v7x TensorCores get work
    rows = _cdiv(B, n)
    if rows >= 256:
        tb = _round_up(rows, _ROW_CHUNK)   # chunked inner loop needs tb % chunk == 0
        chunk = _ROW_CHUNK
    else:
        tb = _round_up(rows, 16)           # bf16 sublane-pack granularity; tiny waste
        chunk = tb
    return n, tb, chunk


def critic_forward(x, params):
    """x: (B, state_dim). params: (in, out) weights, (1, out) biases. Returns (B, 1) f32."""
    B, state_dim = x.shape
    if B == 0:
        return jnp.zeros((0, 1), jnp.float32)

    # bf16 MXU inputs: full MXU rate on all generations and half the dominant HBM
    # read stream.  Accumulation and all post-matmul math stay f32.
    x_bf = x.astype(jnp.bfloat16)
    w1 = params["w1"].astype(jnp.bfloat16)
    w2 = params["w2"].astype(jnp.bfloat16)
    b1 = params["b1"].reshape(1, NET_DIM).astype(jnp.float32)
    b2 = params["b2"].reshape(1, NET_DIM).astype(jnp.float32)
    # (net_dim, 1) -> (1, net_dim): a valid "transpose" only because one dim is 1.
    w3_row = params["w3"].reshape(1, NET_DIM).astype(jnp.float32)
    b3 = params["b3"].reshape(1, 1).astype(jnp.float32)

    vmem_cap = _vmem_capacity_bytes()
    vmem_limit = int(min(vmem_cap // 2, 96 << 20))   # 32 MiB on v7x, 64 MiB on v5e/v6e
    tile_budget = max(vmem_limit - (8 << 20), 8 << 20)

    n_tiles, tb, chunk = _plan_tiles(B, state_dim, tile_budget)
    b_pad = n_tiles * tb
    if b_pad != B:
        x_bf = jnp.pad(x_bf, ((0, b_pad - B), (0, 0)))   # padded rows are dropped below

    # Weights/biases: constant index_map -> same block every grid step (resident in VMEM).
    const2d = lambda arr: pl.BlockSpec(arr.shape, lambda i: (0, 0))

    flops = 2 * b_pad * (state_dim * NET_DIM + NET_DIM * NET_DIM + NET_DIM)
    param_bytes = 2 * (w1.size + w2.size) + 4 * (b1.size + b2.size + w3_row.size + b3.size)
    bytes_accessed = b_pad * state_dim * 2 + b_pad * 4 + param_bytes

    out = pl.pallas_call(
        functools.partial(_critic_kernel, chunk=chunk),
        out_shape=jax.ShapeDtypeStruct((b_pad, 1), jnp.float32),
        grid=(n_tiles,),
        in_specs=[
            pl.BlockSpec((tb, state_dim), lambda i: (i, 0)),   # x: batch-tiled, pipelined
            const2d(w1), const2d(b1),
            const2d(w2), const2d(b2),
            const2d(w3_row), const2d(b3),
        ],
        out_specs=pl.BlockSpec((tb, 1), lambda i: (i, 0)),
        compiler_params=pltpu.CompilerParams(
            dimension_semantics=("parallel",),     # megacore sharding of batch tiles on v7x
            vmem_limit_bytes=vmem_limit,
        ),
        cost_estimate=pl.CostEstimate(
            flops=flops, transcendentals=0, bytes_accessed=bytes_accessed),
    )(x_bf, w1, b1, w2, b2, w3_row, b3)

    return out[:B]


def init_critic_params(key, state_dim):
    """Deterministic init mimicking nn.Linear default (uniform +/- 1/sqrt(fan_in))."""
    ks = jax.random.split(key, 6)

    def linear(kw, kb, fan_in, fan_out):
        bound = 1.0 / jnp.sqrt(jnp.float32(fan_in))
        w = jax.random.uniform(kw, (fan_in, fan_out), jnp.float32, -bound, bound)
        b = jax.random.uniform(kb, (1, fan_out), jnp.float32, -bound, bound)
        return w, b

    w1, b1 = linear(ks[0], ks[1], state_dim, NET_DIM)
    w2, b2 = linear(ks[2], ks[3], NET_DIM, NET_DIM)
    w3, b3 = linear(ks[4], ks[5], NET_DIM, 1)
    return {"w1": w1, "b1": b1, "w2": w2, "b2": b2, "w3": w3, "b3": b3}


def critic_reference(x, p):
    """Reference mirroring the kernel's precision (bf16 MXU inputs, f32 accumulation)."""
    xb = x.astype(jnp.bfloat16)
    w1 = p["w1"].astype(jnp.bfloat16)
    w2 = p["w2"].astype(jnp.bfloat16)
    h1 = jnp.dot(xb, w1, preferred_element_type=jnp.float32) + p["b1"]
    h1 = jnp.maximum(h1, 0.0).astype(jnp.bfloat16)
    h2 = jnp.dot(h1, w2, preferred_element_type=jnp.float32) + p["b2"]
    h2 = jnp.maximum(h2, 0.0)
    return h2 @ p["w3"] + p["b3"]


if __name__ == "__main__":
    key = jax.random.PRNGKey(0)
    k_param, k_x1, k_x2, k_x3 = jax.random.split(key, 4)

    state_dim = 32
    params = init_critic_params(k_param, state_dim)

    # Empty batch: exercises the B == 0 guard.
    out_empty = critic_forward(jnp.zeros((0, state_dim), jnp.float32), params)
    assert out_empty.shape == (0, 1), out_empty.shape

    # Small batch: single tile, single chunk, grid=(1,).
    x_small = jax.random.normal(k_x1, (8, state_dim), jnp.float32)
    out_small = jax.block_until_ready(critic_forward(x_small, params))
    ref_small = critic_reference(x_small, params)
    assert out_small.shape == (8, 1), out_small.shape
    assert jnp.allclose(out_small, ref_small, atol=2e-3, rtol=2e-3), "small-batch mismatch"

    # Ragged medium batch: single tile, multi-chunk inner loop, row padding.
    x_mid = jax.random.normal(k_x2, (1000, state_dim), jnp.float32)
    out_mid = jax.block_until_ready(critic_forward(x_mid, params))
    ref_mid = critic_reference(x_mid, params)
    assert out_mid.shape == (1000, 1), out_mid.shape
    assert jnp.allclose(out_mid, ref_mid, atol=2e-3, rtol=2e-3), "medium-batch mismatch"

    # Larger ragged batch: >= 2 batch tiles (v7x megacore path) with resident weights.
    x_big = jax.random.normal(k_x3, (2500, state_dim), jnp.float32)
    out_big = jax.block_until_ready(critic_forward(x_big, params))
    ref_big = critic_reference(x_big, params)
    assert out_big.shape == (2500, 1), out_big.shape
    assert jnp.allclose(out_big, ref_big, atol=2e-3, rtol=2e-3), "large-batch mismatch"

    print("KERNEL_OK")
</pallas_src>

<mosaic_0001>
module attributes {stable_mosaic.version = 11 : i64} {
  func.func @_critic_kernel(%arg0: i32, %arg1: memref<16x32xbf16, #tpu.memory_space<vmem>>, %arg2: memref<32x64xbf16, #tpu.memory_space<vmem>>, %arg3: memref<1x64xf32, #tpu.memory_space<vmem>>, %arg4: memref<64x64xbf16, #tpu.memory_space<vmem>>, %arg5: memref<1x64xf32, #tpu.memory_space<vmem>>, %arg6: memref<1x64xf32, #tpu.memory_space<vmem>>, %arg7: memref<1x1xf32, #tpu.memory_space<vmem>>, %arg8: memref<16x1xf32, #tpu.memory_space<vmem>>) attributes {dimension_semantics = [#tpu.dimension_semantics<parallel>], iteration_bounds = array<i64: 1>, scalar_prefetch = 0 : i64, scratch_operands = 0 : i64, tpu.core_type = #tpu.core_type<tc>, window_params = [{transform_indices = @transform_0, window_bounds = array<i64: 16, 32>}, {pipeline_mode = #tpu.pipeline_mode<synchronous>, transform_indices = @transform_1, window_bounds = array<i64: 32, 64>}, {pipeline_mode = #tpu.pipeline_mode<synchronous>, transform_indices = @transform_2, window_bounds = array<i64: 1, 64>}, {pipeline_mode = #tpu.pipeline_mode<synchronous>, transform_indices = @transform_3, window_bounds = array<i64: 64, 64>}, {pipeline_mode = #tpu.pipeline_mode<synchronous>, transform_indices = @transform_4, window_bounds = array<i64: 1, 64>}, {pipeline_mode = #tpu.pipeline_mode<synchronous>, transform_indices = @transform_5, window_bounds = array<i64: 1, 64>}, {pipeline_mode = #tpu.pipeline_mode<synchronous>, transform_indices = @transform_6, window_bounds = array<i64: 1, 1>}, {transform_indices = @transform_7, window_bounds = array<i64: 16, 1>}]} {
    %c0_i32 = arith.constant 0 : i32
    %c16_i32 = arith.constant 16 : i32
    %0 = arith.muli %c0_i32, %c16_i32 : i32
    %1 = tpu.assume_multiple %0, 16 : i32
    %2 = arith.index_cast %1 : i32 to index
    %c0 = arith.constant 0 : index
    %3 = vector.load %arg1[%2, %c0] : memref<16x32xbf16, #tpu.memory_space<vmem>>, vector<16x32xbf16>
    %c0_0 = arith.constant 0 : index
    %c0_1 = arith.constant 0 : index
    %4 = vector.load %arg2[%c0_0, %c0_1] : memref<32x64xbf16, #tpu.memory_space<vmem>>, vector<32x64xbf16>
    %cst = arith.constant dense<0.000000e+00> : vector<16x64xf32>
    %5 = tpu.matmul %3, %4, %cst {dimension_numbers = #tpu.dot_dimension_numbers<[1], [0], [0], [1], [0, 0, 1, 1], [], []>} : vector<16x32xbf16>, vector<32x64xbf16>, vector<16x64xf32> -> vector<16x64xf32>
    %c0_2 = arith.constant 0 : index
    %c0_3 = arith.constant 0 : index
    %6 = vector.load %arg3[%c0_2, %c0_3] : memref<1x64xf32, #tpu.memory_space<vmem>>, vector<1x64xf32>
    %7 = vector.broadcast %6 : vector<1x64xf32> to vector<16x64xf32>
    %8 = arith.addf %5, %7 : vector<16x64xf32>
    %cst_4 = arith.constant 0.000000e+00 : f32
    %9 = vector.broadcast %cst_4 : f32 to vector<16x64xf32>
    %10 = arith.maximumf %8, %9 : vector<16x64xf32>
    %11 = arith.truncf %10 : vector<16x64xf32> to vector<16x64xbf16>
    %c0_5 = arith.constant 0 : index
    %c0_6 = arith.constant 0 : index
    %12 = vector.load %arg4[%c0_5, %c0_6] : memref<64x64xbf16, #tpu.memory_space<vmem>>, vector<64x64xbf16>
    %cst_7 = arith.constant dense<0.000000e+00> : vector<16x64xf32>
    %13 = tpu.matmul %11, %12, %cst_7 {dimension_numbers = #tpu.dot_dimension_numbers<[1], [0], [0], [1], [0, 0, 1, 1], [], []>} : vector<16x64xbf16>, vector<64x64xbf16>, vector<16x64xf32> -> vector<16x64xf32>
    %c0_8 = arith.constant 0 : index
    %c0_9 = arith.constant 0 : index
    %14 = vector.load %arg5[%c0_8, %c0_9] : memref<1x64xf32, #tpu.memory_space<vmem>>, vector<1x64xf32>
    %15 = vector.broadcast %14 : vector<1x64xf32> to vector<16x64xf32>
    %16 = arith.addf %13, %15 : vector<16x64xf32>
    %cst_10 = arith.constant 0.000000e+00 : f32
    %17 = vector.broadcast %cst_10 : f32 to vector<16x64xf32>
    %18 = arith.maximumf %16, %17 : vector<16x64xf32>
    %c0_11 = arith.constant 0 : index
    %c0_12 = arith.constant 0 : index
    %19 = vector.load %arg6[%c0_11, %c0_12] : memref<1x64xf32, #tpu.memory_space<vmem>>, vector<1x64xf32>
    %20 = vector.broadcast %19 : vector<1x64xf32> to vector<16x64xf32>
    %21 = arith.mulf %18, %20 : vector<16x64xf32>
    %cst_13 = arith.constant dense<0.000000e+00> : vector<16xf32>
    %22 = vector.multi_reduction <add>, %21, %cst_13 [1] : vector<16x64xf32> to vector<16xf32>
    %23 = vector.shape_cast %22 : vector<16xf32> to vector<16x1xf32>
    %c0_14 = arith.constant 0 : index
    %c0_15 = arith.constant 0 : index
    %24 = vector.load %arg7[%c0_14, %c0_15] : memref<1x1xf32, #tpu.memory_space<vmem>>, vector<1x1xf32>
    %25 = vector.broadcast %24 : vector<1x1xf32> to vector<16x1xf32>
    %26 = arith.addf %23, %25 : vector<16x1xf32>
    %27 = arith.index_cast %1 : i32 to index
    %c0_16 = arith.constant 0 : index
    %28 = vector.load %arg8[%27, %c0_16] : memref<16x1xf32, #tpu.memory_space<vmem>>, vector<16x1xf32>
    tpu.vector_store %arg8[%27, %c0_16], %26 {strides = array<i32>} : memref<16x1xf32, #tpu.memory_space<vmem>>, vector<16x1xf32>,
    %c1_i32 = arith.constant 1 : i32
    return
  }
  func.func @transform_0(%arg0: i32) -> (i32, i32) {
    %c0_i32 = arith.constant 0 : i32
    %c0_i32_0 = arith.constant 0 : i32
    return %arg0, %c0_i32 : i32, i32
  }
  func.func @transform_1(%arg0: i32) -> (i32, i32) {
    %c0_i32 = arith.constant 0 : i32
    %c0_i32_0 = arith.constant 0 : i32
    %c0_i32_1 = arith.constant 0 : i32
    return %c0_i32, %c0_i32_0 : i32, i32
  }
  func.func @transform_2(%arg0: i32) -> (i32, i32) {
    %c0_i32 = arith.constant 0 : i32
    %c0_i32_0 = arith.constant 0 : i32
    %c0_i32_1 = arith.constant 0 : i32
    return %c0_i32, %c0_i32_0 : i32, i32
  }
  func.func @transform_3(%arg0: i32) -> (i32, i32) {
    %c0_i32 = arith.constant 0 : i32
    %c0_i32_0 = arith.constant 0 : i32
    %c0_i32_1 = arith.constant 0 : i32
    return %c0_i32, %c0_i32_0 : i32, i32
  }
  func.func @transform_4(%arg0: i32) -> (i32, i32) {
    %c0_i32 = arith.constant 0 : i32
    %c0_i32_0 = arith.constant 0 : i32
    %c0_i32_1 = arith.constant 0 : i32
    return %c0_i32, %c0_i32_0 : i32, i32
  }
  func.func @transform_5(%arg0: i32) -> (i32, i32) {
    %c0_i32 = arith.constant 0 : i32
    %c0_i32_0 = arith.constant 0 : i32
    %c0_i32_1 = arith.constant 0 : i32
    return %c0_i32, %c0_i32_0 : i32, i32
  }
  func.func @transform_6(%arg0: i32) -> (i32, i32) {
    %c0_i32 = arith.constant 0 : i32
    %c0_i32_0 = arith.constant 0 : i32
    %c0_i32_1 = arith.constant 0 : i32
    return %c0_i32, %c0_i32_0 : i32, i32
  }
  func.func @transform_7(%arg0: i32) -> (i32, i32) {
    %c0_i32 = arith.constant 0 : i32
    %c0_i32_0 = arith.constant 0 : i32
    return %arg0, %c0_i32 : i32, i32
  }
}

</mosaic_0001>

<llo_original>
// kernel: tpu_custom_call.1
$region0: #{tpu_custom_call.1}
  #allocation0 [shape = 'u32[]', space=smem, size = 0x4, offset = 0x4, fixed_abs, tag = 'smem constant byte address 0x4 - core index']
  #allocation1 [shape = 'u32[72,128]{1,0:T(1,128)}', space=vmem, size = 0x9000, scoped, tag = 'internal scratch']
  #allocation2 [shape = 'f32[1,1]{1,0:T(1,128)S(1)}', space=vmem, size = 0x200, scoped, tag = 'scoped memory for tpu_custom_call.1']
  %s0 = inlined_call_operand.hbm [shape: bf16[16,32], index: 0, kind: input, shape index: {}]
  %s1 = inlined_call_operand.hbm [shape: bf16[32,64], index: 1, kind: input, shape index: {}]
  %s2 = inlined_call_operand.vmem [shape: f32[1,64], index: 2, kind: input, shape index: {}]
  %s3 = inlined_call_operand.hbm [shape: bf16[64,64], index: 3, kind: input, shape index: {}]
  %s4 = inlined_call_operand.vmem [shape: f32[1,64], index: 4, kind: input, shape index: {}]
  %s5 = inlined_call_operand.vmem [shape: f32[1,64], index: 5, kind: input, shape index: {}]
  %s6 = inlined_call_operand.<no memory space> [shape: f32[1,1], index: 6, kind: input, shape index: {}]
  %s7 = inlined_call_operand.vmem [shape: f32[16,1], index: 7, kind: output, shape index: {}]
  %s8 = sld [smem:[#allocation0]]
  $region50: #{tpu_custom_call.1} parent=0
    _
  %s10 = ssub.s32 1, %s8
  %s11 = scalar_select 0, %s10, %s8
  %v12 = vstv %s6
  %13 = vst [vmem:[#allocation2] sm:$0x1] %v12
  $region1: #{tpu_custom_call.1} parent=0
    #allocation3 [shape = 'u8[4096]{0}', space=vmem, size = 0x1000, scoped, tag = 'input window, operand 0, single buffered']
    #allocation4 [shape = 's32[1]{0}', space=sflag, size = 0x4, scoped, tag = 'scoped memory for tpu_custom_call.1']
    #allocation5 [shape = 'u8[8192]{0}', space=vmem, size = 0x2000, scoped, tag = 'input window, operand 1, single buffered']
    #allocation6 [shape = 's32[1]{0}', space=sflag, size = 0x4, scoped, tag = 'scoped memory for tpu_custom_call.1']
    #allocation7 [shape = 'u8[16384]{0}', space=vmem, size = 0x4000, scoped, tag = 'input window, operand 3, single buffered']
    %14 = vsyncpa [#allocation4], 0
    %15 = vsyncpa [#allocation6], 0
    // Predicated region
    $region2: #{tpu_custom_call.1} parent=1 // pred_check
      _
    $region3: #{tpu_custom_call.1} parent=1 // pred_check_branch
      %17 = sbr.rel (0) target = $region5
    $region4: #{tpu_custom_call.1} parent=1 // pred_region
      %19 = vsyncadd [#allocation4], 0
      %s20 = sshll.u32 %s0, 4
      %s21 = int_to_ptr.hbm [resolvable:$true] %s20
      %s22 = sshll.u32 [#allocation3], 4
      %s23 = int_to_ptr.vmem [resolvable:$true] %s22
      %28 = dma.hbm_to_vmem [thread:$0]  %s21, 128, %s23, [#allocation4], 64, 64, 4
    $region5: #{tpu_custom_call.1} parent=1 // pred_fallthru
      _
    // Predicated region
    $region6: #{tpu_custom_call.1} parent=1 // pred_check
      _
    $region7: #{tpu_custom_call.1} parent=1 // pred_check_branch
      %30 = sbr.rel (0) target = $region9
    $region8: #{tpu_custom_call.1} parent=1 // pred_region
      %32 = vsyncadd [#allocation6], 0
      %s33 = sshll.u32 %s1, 4
      %s34 = int_to_ptr.hbm [resolvable:$true] %s33
      %s35 = sshll.u32 [#allocation5], 4
      %s36 = int_to_ptr.vmem [resolvable:$true] %s35
      %41 = dma.hbm_to_vmem [thread:$0]  %s34, 256, %s36, [#allocation6], 64, 64, 4
    $region9: #{tpu_custom_call.1} parent=1 // pred_fallthru
      _
    // Predicated region
    $region10: #{tpu_custom_call.1} parent=1 // pred_check
      _
    $region11: #{tpu_custom_call.1} parent=1 // pred_check_branch
      %43 = sbr.rel (0) target = $region13
    $region12: #{tpu_custom_call.1} parent=1 // pred_region
      _
    $region13: #{tpu_custom_call.1} parent=1 // pred_fallthru
      _
    // Predicated region
    $region14: #{tpu_custom_call.1} parent=1 // pred_check
      _
    $region15: #{tpu_custom_call.1} parent=1 // pred_check_branch
      %45 = sbr.rel (0) target = $region17
    $region16: #{tpu_custom_call.1} parent=1 // pred_region
      %47 = vsyncadd [#allocation6], 0
      %s48 = sshll.u32 %s3, 4
      %s49 = int_to_ptr.hbm [resolvable:$true] %s48
      %s50 = sshll.u32 [#allocation7], 4
      %s51 = int_to_ptr.vmem [resolvable:$true] %s50
      %56 = dma.hbm_to_vmem [thread:$0]  %s49, 512, %s51, [#allocation6], 64, 64, 4
    $region17: #{tpu_custom_call.1} parent=1 // pred_fallthru
      _
    // Predicated region
    $region18: #{tpu_custom_call.1} parent=1 // pred_check
      _
    $region19: #{tpu_custom_call.1} parent=1 // pred_check_branch
      %58 = sbr.rel (0) target = $region21
    $region20: #{tpu_custom_call.1} parent=1 // pred_region
      _
    $region21: #{tpu_custom_call.1} parent=1 // pred_fallthru
      _
    // Predicated region
    $region22: #{tpu_custom_call.1} parent=1 // pred_check
      _
    $region23: #{tpu_custom_call.1} parent=1 // pred_check_branch
      %60 = sbr.rel (0) target = $region25
    $region24: #{tpu_custom_call.1} parent=1 // pred_region
      _
    $region25: #{tpu_custom_call.1} parent=1 // pred_fallthru
      _
    // Predicated region
    $region26: #{tpu_custom_call.1} parent=1 // pred_check
      _
    $region27: #{tpu_custom_call.1} parent=1 // pred_check_branch
      %62 = sbr.rel (0) target = $region29
    $region28: #{tpu_custom_call.1} parent=1 // pred_region
      _
    $region29: #{tpu_custom_call.1} parent=1 // pred_fallthru
      _
    // Predicated region
    $region30: #{tpu_custom_call.1} parent=1 // pred_check
      _
    $region31: #{tpu_custom_call.1} parent=1 // pred_check_branch
      %64 = sbr.rel (0) target = $region33
    $region32: #{tpu_custom_call.1} parent=1 // pred_region
      %66 = dma.done [#allocation4], 128
    $region33: #{tpu_custom_call.1} parent=1 // pred_fallthru
      _
    // Predicated region
    $region34: #{tpu_custom_call.1} parent=1 // pred_check
      _
    $region35: #{tpu_custom_call.1} parent=1 // pred_check_branch
      %68 = sbr.rel (0) target = $region37
    $region36: #{tpu_custom_call.1} parent=1 // pred_region
      %70 = dma.done [#allocation6], 256
    $region37: #{tpu_custom_call.1} parent=1 // pred_fallthru
      _
    // Predicated region
    $region38: #{tpu_custom_call.1} parent=1 // pred_check
      _
    $region39: #{tpu_custom_call.1} parent=1 // pred_check_branch
      %72 = sbr.rel (0) target = $region41
    $region40: #{tpu_custom_call.1} parent=1 // pred_region
      %74 = dma.done [#allocation6], 512
    $region41: #{tpu_custom_call.1} parent=1 // pred_fallthru
      _
    %v76 = vld [vmem:[#allocation3] sm:$0xf]
    %v77 = vld [vmem:[#allocation3 + $0x4] sm:$0xf]
    %v78 = vld [vmem:[#allocation5] sm:$0xf]
    %v79 = vld [vmem:[#allocation5 + $0x4] sm:$0xf]
    %v80 = vld [vmem:[#allocation5 + $0x8] sm:$0xf]
    %v81 = vld [vmem:[#allocation5 + $0xc] sm:$0xf]
    %v82 = vld [vmem:[%s2] sm:$0x1]
    %v84 = vperm.slane %v82, 0
    %v88 = vunpack.c.l.b16 %v76
    %v89 = vunpack.c.l.b16 %v77
    %v90 = vpack.c.b16 %v89, %v88
    %v95 = vunpack.c.l.b16 %v78
    %v96 = vunpack.c.l.b16 %v79
    %v97 = vunpack.c.l.b16 %v80
    %v98 = vunpack.c.l.b16 %v81
    %v99 = vpack.c.b16 %v96, %v95
    %v100 = vpack.c.b16 %v98, %v97
    %vm103 = vcmask 261120
    %v105 = vsel %vm103, %v90, 0
    %107 = vmatpush.bf16.msra.mxu0 0
    %108 = vmatpush.bf16.msra.mxu0 0
    %109 = vmatpush.bf16.msra.mxu0 0
    %110 = vmatpush.bf16.msra.mxu0 0
    %111 = vmatpush.bf16.msra.mxu0 0
    %112 = vmatpush.bf16.msra.mxu0 0
    %113 = vmatpush.bf16.msra.mxu0 %v100
    %114 = vmatpush.bf16.msra.mxu0 %v99
    %115 = vmatmul.bf16.gmra.mxu0 %v105
    %v116 = vpop.f32.mrf.mxu0
    %v117 = vadd.f32 %v84, %v116
    %v118 = vpop.f32.mrf.mxu0
    %v119 = vadd.f32 %v84, %v118
    %120 = vdwg.mxu0
    %v121 = vmax.f32 %v117, 0.0
    %v122 = vmax.f32 %v119, 0.0
    %v123 = vpack.c.bf16 %v122, %v121
    %v124 = vld [vmem:[#allocation7] sm:$0xf]
    %v125 = vld [vmem:[#allocation7 + $0x4] sm:$0xf]
    %v126 = vld [vmem:[#allocation7 + $0x8] sm:$0xf]
    %v127 = vld [vmem:[#allocation7 + $0xc] sm:$0xf]
    %v128 = vld [vmem:[#allocation7 + $0x10] sm:$0xf]
    %v129 = vld [vmem:[#allocation7 + $0x14] sm:$0xf]
    %v130 = vld [vmem:[#allocation7 + $0x18] sm:$0xf]
    %v131 = vld [vmem:[#allocation7 + $0x1c] sm:$0xf]
    %v132 = vld [vmem:[%s4] sm:$0x1]
    %v134 = vperm.slane %v132, 0
    %v144 = vunpack.c.l.b16 %v124
    %v145 = vunpack.c.l.b16 %v125
    %v146 = vunpack.c.l.b16 %v126
    %v147 = vunpack.c.l.b16 %v127
    %v148 = vunpack.c.l.b16 %v128
    %v149 = vunpack.c.l.b16 %v129
    %v150 = vunpack.c.l.b16 %v130
    %v151 = vunpack.c.l.b16 %v131
    %v152 = vpack.c.b16 %v145, %v144
    %v153 = vpack.c.b16 %v147, %v146
    %v154 = vpack.c.b16 %v149, %v148
    %v155 = vpack.c.b16 %v151, %v150
    %vm160 = vcmask 523264
    %v162 = vsel %vm160, %v123, 0
    %164 = vmatpush.bf16.msra.mxu0 0
    %165 = vmatpush.bf16.msra.mxu0 0
    %166 = vmatpush.bf16.msra.mxu0 0
    %167 = vmatpush.bf16.msra.mxu0 0
    %168 = vmatpush.bf16.msra.mxu0 %v155
    %169 = vmatpush.bf16.msra.mxu0 %v154
    %170 = vmatpush.bf16.msra.mxu0 %v153
    %171 = vmatpush.bf16.msra.mxu0 %v152
    %172 = vmatmul.bf16.gmra.mxu0 %v162
    %v173 = vpop.f32.mrf.mxu0
    %v174 = vadd.f32 %v134, %v173
    %v175 = vpop.f32.mrf.mxu0
    %v176 = vadd.f32 %v134, %v175
    %177 = vdwg.mxu0
    %v178 = vmax.f32 %v174, 0.0
    %v179 = vmax.f32 %v176, 0.0
    %v180 = vld [vmem:[%s5] sm:$0x1]
    %v182 = vperm.slane %v180, 0
    %v184 = vmul.f32 %v178, %v182
    %v185 = vmul.f32 %v179, %v182
    %v186 = vsel %vm160, %v184, 0.0
    %187 = vadd.xlane.f32.xlu0 %v186
    %v188 = vpop.xlane.xlu0 %187
    %v189 = vsel %vm160, %v185, 0.0
    %190 = vadd.xlane.f32.xlu0 %v189
    %v191 = vpop.xlane.xlu0 %190
    %v192 = vld [vmem:[#allocation2] sm:$0x1]
    %v194 = vperm.slane %v192, 0
    %v196 = vadd.f32 %v188, %v194
    %v197 = vadd.f32 %v191, %v194
    %vm198 = vcmask 7168
    %199 = vst.msk [vmem:[%s7] sm:$0xff] %vm198, %v196
    %200 = vst.msk [vmem:[%s7 + $0x8] sm:$0xff] %vm198, %v197
    // Predicated region
    $region42: #{tpu_custom_call.1} parent=1 // pred_check
      _
    $region43: #{tpu_custom_call.1} parent=1 // pred_check_branch
      %202 = sbr.rel (0) target = $region45
    $region44: #{tpu_custom_call.1} parent=1 // pred_region
      _
    $region45: #{tpu_custom_call.1} parent=1 // pred_fallthru
      _
    // Predicated region
    $region46: #{tpu_custom_call.1} parent=1 // pred_check
      _
    $region47: #{tpu_custom_call.1} parent=1 // pred_check_branch
      %204 = sbr.rel (0) target = $region49
    $region48: #{tpu_custom_call.1} parent=1 // pred_region
      _
    $region49: #{tpu_custom_call.1} parent=1 // pred_fallthru
      _
    %205 = vsyncpa [#allocation4], 1
    %206 = vsyncpa [#allocation6], 1

</llo_original>
